<compile_context>
chip_gen: v5e
topology: v5e:2x2
jax: 0.10.0
libtpu: 0.0.40
codegen_flags: <defaults>
</compile_context>

<pallas_src>
import math

import jax
import jax.numpy as jnp
from jax.experimental import pallas as pl
from jax.experimental.pallas import tpu as pltpu


_BLOCK_BUDGET_BYTES = 4 << 20   # ~4 MiB per x block (review target for v6e/v7x)
_VMEM_LIMIT_BYTES = 32 << 20    # 2*(x + out + pe) @ 4 MiB ≈ 24 MiB; safe on all gens


# ---------------------------------------------------------------------------
# PE table (matches the PyTorch registered buffer, sliced to seq_len).
# ---------------------------------------------------------------------------
def _build_pe_table(seq_len, d_model, dtype=jnp.float32):
    position = jnp.arange(seq_len, dtype=jnp.float32)[:, None]            # (S, 1)
    div_term = jnp.exp(
        jnp.arange(0, d_model, 2, dtype=jnp.float32) * (-math.log(10000.0) / d_model)
    )                                                                     # (ceil(D/2),)
    angles = position * div_term                                          # (S, ceil(D/2))
    pe = jnp.zeros((seq_len, d_model), dtype=jnp.float32)
    pe = pe.at[:, 0::2].set(jnp.sin(angles))
    pe = pe.at[:, 1::2].set(jnp.cos(angles)[:, : d_model // 2])
    return pe.astype(dtype)                                               # (S, D)


# ---------------------------------------------------------------------------
# Kernels: pure elementwise add of a resident PE tile (f32 accumulate).
# ---------------------------------------------------------------------------
def _pe_add_kernel_3d(x_ref, pe_ref, o_ref):
    # x_ref/o_ref: (TB, TS, D) ; pe_ref: (TS, D)
    x = x_ref[...].astype(jnp.float32)
    pe = pe_ref[...].astype(jnp.float32)
    o_ref[...] = (x + pe[None]).astype(o_ref.dtype)


def _pe_add_kernel_2d(x_ref, pe_ref, o_ref):
    # x_ref/o_ref: (TB, TL) ; pe_ref: (1, TL) (broadcast over batch rows)
    o_ref[...] = (
        x_ref[...].astype(jnp.float32) + pe_ref[...].astype(jnp.float32)
    ).astype(o_ref.dtype)


# ---------------------------------------------------------------------------
# Tile pickers (trace-time Python).
# ---------------------------------------------------------------------------
def _sublane(itemsize):
    return max(8, 32 // max(1, itemsize))      # 8 (f32) / 16 (bf16) / 32 (int8)


def _round_up(x, m):
    return ((x + m - 1) // m) * m


def _pick_tiles_3d(B, S, D, itemsize):
    """Return (TB, TS) for blocks of shape (TB, TS, D); D % 128 == 0."""
    sub = _sublane(itemsize)
    row_bytes = D * itemsize
    budget = _BLOCK_BUDGET_BYTES
    min_ts = S if S <= sub else sub

    if B * min_ts * row_bytes <= budget:
        # Whole batch fits with the minimum seq tile -> fold batch, grow seq.
        tb = B
        if S <= sub:
            ts = S                                            # full extent
        else:
            ts_cap = max(sub, ((budget // (B * row_bytes)) // sub) * sub)
            ts = min(_round_up(S, sub), ts_cap)               # multiple of sub
    else:
        ts = min_ts
        tb = min(B, max(1, budget // (ts * row_bytes)))

    # Megacore: avoid a degenerate single-step grid when there is room to split.
    if pl.cdiv(S, ts) * pl.cdiv(B, tb) == 1:
        if S > sub:
            ts = max(sub, _round_up(pl.cdiv(S, 2), sub))
        elif B > 1:
            tb = pl.cdiv(B, 2)
    return tb, ts


def _pick_tiles_2d(B, L, itemsize):
    """Return (TB, TL) for blocks of shape (TB, TL) over the folded (B, S*D) view."""
    sub = _sublane(itemsize)
    budget = _BLOCK_BUDGET_BYTES
    min_tb = B if B <= sub else sub

    if L <= 128:
        tl = L                                                # full extent
    else:
        tl_cap = max(128, ((budget // (min_tb * itemsize)) // 128) * 128)
        tl = min(_round_up(L, 128), tl_cap)                   # multiple of 128

    tb_fit = budget // max(1, tl * itemsize)
    if tb_fit >= B:
        tb = B                                                # full extent
    else:
        tb = min(B, max(min_tb, (tb_fit // sub) * sub if tb_fit >= sub else min_tb))
    return tb, tl


# ---------------------------------------------------------------------------
# Wrapper: x (B, S, D) -> x + pe[:S]   (same shape / dtype as x)
# ---------------------------------------------------------------------------
def positional_encoding_add(x, *, donate_x=False):
    B, S, D = x.shape
    itemsize = jnp.dtype(x.dtype).itemsize
    # Low-precision x: keep PE resident in x.dtype (halves PE VMEM/DMA bytes);
    # the add is still done in f32 in-kernel and rounded back to x.dtype.
    pe_dtype = x.dtype if itemsize < 4 else jnp.float32
    pe = _build_pe_table(S, D, dtype=pe_dtype)

    io_aliases = {0: 0} if donate_x else {}
    cparams = pltpu.CompilerParams(
        dimension_semantics=("parallel", "parallel"),
        vmem_limit_bytes=_VMEM_LIMIT_BYTES,
    )

    if D % 128 == 0:
        # Lane-dense 3D path: grid = (seq_blocks, batch_blocks); batch innermost
        # so the PE tile for a given seq block is not re-DMA'd across batches.
        tb, ts = _pick_tiles_3d(B, S, D, itemsize)
        grid = (pl.cdiv(S, ts), pl.cdiv(B, tb))
        return pl.pallas_call(
            _pe_add_kernel_3d,
            out_shape=jax.ShapeDtypeStruct((B, S, D), x.dtype),
            grid_spec=pltpu.PrefetchScalarGridSpec(
                num_scalar_prefetch=0,
                grid=grid,
                in_specs=[
                    pl.BlockSpec((tb, ts, D), lambda s, b: (b, s, 0)),
                    pl.BlockSpec((ts, D), lambda s, b: (s, 0)),   # ignores batch
                ],
                out_specs=pl.BlockSpec((tb, ts, D), lambda s, b: (b, s, 0)),
            ),
            compiler_params=cparams,
            input_output_aliases=io_aliases,
        )(x, pe)

    # Small-D path (e.g. D=32): fold (S, D) into one lane axis of length S*D so
    # stores are lane-dense; batch is tiled too (no untiled-B VMEM blowup).
    L = S * D
    x2 = x.reshape(B, L)
    pe2 = pe.reshape(1, L)
    tb, tl = _pick_tiles_2d(B, L, itemsize)
    grid = (pl.cdiv(L, tl), pl.cdiv(B, tb))
    out2 = pl.pallas_call(
        _pe_add_kernel_2d,
        out_shape=jax.ShapeDtypeStruct((B, L), x.dtype),
        grid_spec=pltpu.PrefetchScalarGridSpec(
            num_scalar_prefetch=0,
            grid=grid,
            in_specs=[
                pl.BlockSpec((tb, tl), lambda l, b: (b, l)),
                pl.BlockSpec((1, tl), lambda l, b: (0, l)),       # ignores batch
            ],
            out_specs=pl.BlockSpec((tb, tl), lambda l, b: (b, l)),
        ),
        compiler_params=cparams,
        input_output_aliases=io_aliases,
    )(x2, pe2)
    return out2.reshape(B, S, D)


if __name__ == "__main__":
    key = jax.random.PRNGKey(0)

    # Case 1: small D (folded lane-dense 2D path), matches the module's test shape.
    B, S, D = 2, 8, 32
    x = jax.random.normal(key, (B, S, D), dtype=jnp.float32)
    out = jax.block_until_ready(positional_encoding_add(x))
    ref = x + _build_pe_table(S, D)[None]
    assert out.shape == x.shape and out.dtype == x.dtype
    assert jnp.allclose(out, ref, atol=1e-5, rtol=1e-5), "mismatch (small-D path)"

    # Case 2: D multiple of 128 (tiled 3D path, batch folded into block).
    B2, S2, D2 = 2, 16, 128
    x2 = jax.random.normal(jax.random.PRNGKey(1), (B2, S2, D2), dtype=jnp.float32)
    out2 = jax.block_until_ready(positional_encoding_add(x2))
    ref2 = x2 + _build_pe_table(S2, D2)[None]
    assert out2.shape == x2.shape and out2.dtype == x2.dtype
    assert jnp.allclose(out2, ref2, atol=1e-5, rtol=1e-5), "mismatch (3D path)"

    # Case 3: bf16 input (PE resident in bf16, f32 accumulate, bf16 output).
    x3 = jax.random.normal(jax.random.PRNGKey(2), (2, 16, 128), dtype=jnp.float32)
    x3 = x3.astype(jnp.bfloat16)
    out3 = jax.block_until_ready(positional_encoding_add(x3))
    ref3 = (
        x3.astype(jnp.float32)
        + _build_pe_table(16, 128, jnp.bfloat16).astype(jnp.float32)[None]
    ).astype(jnp.bfloat16)
    assert out3.shape == x3.shape and out3.dtype == x3.dtype
    assert jnp.allclose(
        out3.astype(jnp.float32), ref3.astype(jnp.float32), atol=2e-2, rtol=2e-2
    ), "mismatch (bf16 path)"

    print("KERNEL_OK")
</pallas_src>

<mosaic_0001>
module attributes {stable_mosaic.version = 11 : i64} {
  func.func @_pe_add_kernel_2d(%arg0: i32, %arg1: i32, %arg2: memref<2x256xf32, #tpu.memory_space<vmem>>, %arg3: memref<1x256xf32, #tpu.memory_space<vmem>>, %arg4: memref<2x256xf32, #tpu.memory_space<vmem>>) attributes {dimension_semantics = [#tpu.dimension_semantics<parallel>, #tpu.dimension_semantics<parallel>], iteration_bounds = array<i64: 1, 1>, scalar_prefetch = 0 : i64, scratch_operands = 0 : i64, tpu.core_type = #tpu.core_type<tc>, window_params = [{transform_indices = @transform_0, window_bounds = array<i64: 2, 256>}, {transform_indices = @transform_1, window_bounds = array<i64: 1, 256>}, {transform_indices = @transform_2, window_bounds = array<i64: 2, 256>}]} {
    %c0 = arith.constant 0 : index
    %c0_0 = arith.constant 0 : index
    %0 = vector.load %arg2[%c0, %c0_0] : memref<2x256xf32, #tpu.memory_space<vmem>>, vector<2x256xf32>
    %c0_1 = arith.constant 0 : index
    %c0_2 = arith.constant 0 : index
    %1 = vector.load %arg3[%c0_1, %c0_2] : memref<1x256xf32, #tpu.memory_space<vmem>>, vector<1x256xf32>
    %2 = vector.broadcast %1 : vector<1x256xf32> to vector<2x256xf32>
    %3 = arith.addf %0, %2 : vector<2x256xf32>
    %c0_3 = arith.constant 0 : index
    %c0_4 = arith.constant 0 : index
    %4 = vector.load %arg4[%c0_3, %c0_4] : memref<2x256xf32, #tpu.memory_space<vmem>>, vector<2x256xf32>
    tpu.vector_store %arg4[%c0_3, %c0_4], %3 {strides = array<i32>} : memref<2x256xf32, #tpu.memory_space<vmem>>, vector<2x256xf32>,
    return
  }
  func.func @transform_0(%arg0: i32, %arg1: i32) -> (i32, i32) {
    %c0_i32 = arith.constant 0 : i32
    return %arg1, %arg0 : i32, i32
  }
  func.func @transform_1(%arg0: i32, %arg1: i32) -> (i32, i32) {
    %c0_i32 = arith.constant 0 : i32
    %c0_i32_0 = arith.constant 0 : i32
    return %c0_i32, %arg0 : i32, i32
  }
  func.func @transform_2(%arg0: i32, %arg1: i32) -> (i32, i32) {
    %c0_i32 = arith.constant 0 : i32
    return %arg1, %arg0 : i32, i32
  }
}

</mosaic_0001>

<llo_original>
// kernel: tpu_custom_call.1
$region0: #{tpu_custom_call.1}
  #allocation0 [shape = 'u32[]', space=smem, size = 0x4, offset = 0x4, fixed_abs, tag = 'smem constant byte address 0x4 - core index']
  #allocation1 [shape = 'u32[72,128]{1,0:T(1,128)}', space=vmem, size = 0x9000, scoped, tag = 'internal scratch']
  %s0 = inlined_call_operand.hbm [shape: f32[2,256], index: 0, kind: input, shape index: {}]
  %s1 = inlined_call_operand.hbm [shape: f32[1,256], index: 1, kind: input, shape index: {}]
  %s2 = inlined_call_operand.hbm [shape: f32[2,256], index: 2, kind: output, shape index: {}]
  %s3 = sld [smem:[#allocation0]]
  $region26: #{tpu_custom_call.1} parent=0
    _
  %s5 = ssub.s32 1, %s3
  %s6 = scalar_select 0, %s5, %s3
  $region1: #{tpu_custom_call.1} parent=0
    #allocation2 [shape = 'u8[2048]{0}', space=vmem, size = 0x800, scoped, tag = 'input window, operand 0, single buffered']
    #allocation3 [shape = 's32[1]{0}', space=sflag, size = 0x4, scoped, tag = 'scoped memory for tpu_custom_call.1']
    #allocation4 [shape = 's32[1]{0}', space=sflag, size = 0x4, scoped, tag = 'scoped memory for tpu_custom_call.1']
    #allocation5 [shape = 'u8[1024]{0}', space=vmem, size = 0x400, scoped, tag = 'input window, operand 1, single buffered']
    #allocation6 [shape = 's32[1]{0}', space=sflag, size = 0x4, scoped, tag = 'scoped memory for tpu_custom_call.1']
    #allocation7 [shape = 'u8[2048]{0}', space=vmem, size = 0x800, scoped, tag = 'output window, operand 0, single buffered']
    %7 = vsyncpa [#allocation3], 0
    %8 = vsyncpa [#allocation6], 0
    %9 = vsyncpa [#allocation4], 0
    // Predicated region
    $region2: #{tpu_custom_call.1} parent=1 // pred_check
      _
    $region3: #{tpu_custom_call.1} parent=1 // pred_check_branch
      %11 = sbr.rel (0) target = $region5
    $region4: #{tpu_custom_call.1} parent=1 // pred_region
      %13 = vsyncadd [#allocation3], 0
      %s15 = sshll.u32 %s0, 4
      %s16 = int_to_ptr.hbm [resolvable:$true] %s15
      %s17 = sshll.u32 [#allocation2], 4
      %s18 = int_to_ptr.vmem [resolvable:$true] %s17
      %20 = dma.hbm_to_vmem [thread:$0]  %s16, 64, %s18, [#allocation3]
    $region5: #{tpu_custom_call.1} parent=1 // pred_fallthru
      _
    // Predicated region
    $region6: #{tpu_custom_call.1} parent=1 // pred_check
      _
    $region7: #{tpu_custom_call.1} parent=1 // pred_check_branch
      %22 = sbr.rel (0) target = $region9
    $region8: #{tpu_custom_call.1} parent=1 // pred_region
      %24 = vsyncadd [#allocation6], 0
      %s26 = sshll.u32 %s1, 4
      %s27 = int_to_ptr.hbm [resolvable:$true] %s26
      %s28 = sshll.u32 [#allocation5], 4
      %s29 = int_to_ptr.vmem [resolvable:$true] %s28
      %31 = dma.hbm_to_vmem [thread:$0]  %s27, 32, %s29, [#allocation6]
    $region9: #{tpu_custom_call.1} parent=1 // pred_fallthru
      _
    // Predicated region
    $region10: #{tpu_custom_call.1} parent=1 // pred_check
      _
    $region11: #{tpu_custom_call.1} parent=1 // pred_check_branch
      %33 = sbr.rel (0) target = $region13
    $region12: #{tpu_custom_call.1} parent=1 // pred_region
      %35 = dma.done [#allocation3], 64
    $region13: #{tpu_custom_call.1} parent=1 // pred_fallthru
      _
    // Predicated region
    $region14: #{tpu_custom_call.1} parent=1 // pred_check
      _
    $region15: #{tpu_custom_call.1} parent=1 // pred_check_branch
      %37 = sbr.rel (0) target = $region17
    $region16: #{tpu_custom_call.1} parent=1 // pred_region
      %39 = dma.done [#allocation6], 32
    $region17: #{tpu_custom_call.1} parent=1 // pred_fallthru
      _
    %v40 = vld [vmem:[#allocation2] sm:$0xf]
    %v41 = vld [vmem:[#allocation5] sm:$0x3]
    %v43 = vperm.slane %v41, 0
    %v44 = vperm.slane %v41, 1
    %v45 = vrot.slane %v44, 6
    %vm46 = vcmask 1041408
    %v47 = vsel %vm46, %v43, %v45
    %v49 = vadd.f32 %v40, %v47
    %50 = vst [vmem:[#allocation7] sm:$0xf] %v49
    // Predicated region
    $region18: #{tpu_custom_call.1} parent=1 // pred_check
      _
    $region19: #{tpu_custom_call.1} parent=1 // pred_check_branch
      %52 = sbr.rel (0) target = $region21
    $region20: #{tpu_custom_call.1} parent=1 // pred_region
      %54 = vsyncadd [#allocation4], 0
      %s56 = sshll.u32 [#allocation7], 4
      %s57 = int_to_ptr.vmem [resolvable:$true] %s56
      %s58 = sshll.u32 %s2, 4
      %s59 = int_to_ptr.hbm [resolvable:$true] %s58
      %61 = dma.vmem_to_hbm [thread:$0]  %s57, 64, %s59, [#allocation4]
    $region21: #{tpu_custom_call.1} parent=1 // pred_fallthru
      _
    // Predicated region
    $region22: #{tpu_custom_call.1} parent=1 // pred_check
      _
    $region23: #{tpu_custom_call.1} parent=1 // pred_check_branch
      %63 = sbr.rel (0) target = $region25
    $region24: #{tpu_custom_call.1} parent=1 // pred_region
      %65 = dma.done [#allocation4], 64
    $region25: #{tpu_custom_call.1} parent=1 // pred_fallthru
      _
    %66 = vsyncpa [#allocation3], 1
    %67 = vsyncpa [#allocation6], 1
    %68 = vsyncpa [#allocation4], 1

</llo_original>
